<compile_context>
chip_gen: v6e
topology: v6e:2x2x1
jax: 0.10.0
libtpu: 0.0.40
codegen_flags: <defaults>
</compile_context>

<pallas_src>
import functools

import jax
import jax.numpy as jnp
from jax.experimental import pallas as pl
from jax.experimental.pallas import tpu as pltpu


def _round_up(x, m):
    return ((x + m - 1) // m) * m


def gru_kernel(p_ref, in_ref, out_ref, *, F):
    """One GRU-cell step (hidden=1) + Linear(1,1) on a lane-dense batch tile.

    p_ref:   SMEM f32[3*F + 9] packed parameters (scalar-prefetched):
               [0:F]      W_ir        [F:2F]   W_iz        [2F:3F]  W_in
               [3F+0..2]  W_hr, W_hz, W_hn
               [3F+3..6]  b_r (=b_ir+b_hr), b_z (=b_iz+b_hz), b_in, b_hn
               [3F+7..8]  linear_out weight, bias
    in_ref:  VMEM [D, s_blk, 128] (f32 or bf16); plane 0 = h0, planes 1.. = x.
    out_ref: VMEM f32[s_blk, 128]; dense output slab (full 128-lane stores).
    """
    h0 = in_ref[0].astype(jnp.float32)            # [s_blk, 128]
    o = 3 * F

    # Gate pre-activations via unrolled VPU broadcast-FMAs over the F features.
    pre_r = p_ref[o + 0] * h0 + p_ref[o + 3]      # W_hr*h0 + (b_ir + b_hr)
    pre_z = p_ref[o + 1] * h0 + p_ref[o + 4]      # W_hz*h0 + (b_iz + b_hz)
    pre_n = jnp.full_like(h0, p_ref[o + 5])       # b_in
    for f in range(F):                            # static unroll, F is small
        xf = in_ref[f + 1].astype(jnp.float32)    # [s_blk, 128]
        pre_r = pre_r + p_ref[f] * xf
        pre_z = pre_z + p_ref[F + f] * xf
        pre_n = pre_n + p_ref[2 * F + f] * xf

    r = jax.nn.sigmoid(pre_r)                     # EUP
    z = jax.nn.sigmoid(pre_z)                     # EUP
    n = jnp.tanh(pre_n + r * (p_ref[o + 2] * h0 + p_ref[o + 6]))   # EUP
    h = (1.0 - z) * n + z * h0                    # GRU hidden update

    out_ref[...] = p_ref[o + 7] * h + p_ref[o + 8]    # Linear(1, 1)


def make_gru_module_params(input_size, key):
    """Deterministic init matching GRUModule._initialize_weights (PyTorch layout)."""
    k_ih, k_hh, k_lin = jax.random.split(key, 3)

    def xavier(k, shape):
        fan_out, fan_in = shape                   # PyTorch weight layout [out, in]
        bound = (6.0 / (fan_in + fan_out)) ** 0.5
        return jax.random.uniform(k, shape, jnp.float32, -bound, bound)

    return {
        "weight_ih": xavier(k_ih, (3, input_size)),   # gru_in.weight_ih_l0 (r,z,n)
        "weight_hh": xavier(k_hh, (3, 1)),            # gru_in.weight_hh_l0
        "bias_ih": jnp.zeros((3,), jnp.float32),
        "bias_hh": jnp.zeros((3,), jnp.float32),
        "weight_out": xavier(k_lin, (1, 1)),          # linear_out.weight
        "bias_out": jnp.zeros((1,), jnp.float32),     # linear_out.bias
    }


def pack_params_for_kernel(params):
    """Consolidate all GRU + Linear parameters into one flat SMEM scalar vector."""
    w_ih = params["weight_ih"].astype(jnp.float32)          # [3, F] rows: r, z, n
    w_hh = params["weight_hh"][:, 0].astype(jnp.float32)    # [3]
    b_ih = params["bias_ih"].astype(jnp.float32)
    b_hh = params["bias_hh"].astype(jnp.float32)
    tail = jnp.array(
        [w_hh[0], w_hh[1], w_hh[2],
         b_ih[0] + b_hh[0],          # combined r-gate bias
         b_ih[1] + b_hh[1],          # combined z-gate bias
         b_ih[2],                    # b_in
         b_hh[2],                    # b_hn (gated by r)
         params["weight_out"][0, 0],
         params["bias_out"][0]],
        jnp.float32)
    return jnp.concatenate([w_ih.reshape(-1), tail])         # f32[3F + 9]


def _choose_block_rows(s_tot, block_rows, sub):
    """Pick the sublane-row tile: big (amortize per-step overhead), (8|16)-aligned,
    and giving a grid of at least 2 blocks whenever the batch allows (v7x megacore)."""
    if block_rows % sub:
        raise ValueError(f"block_rows={block_rows} must be a multiple of {sub}")
    if s_tot <= sub:
        return s_tot                          # single full-extent block (tiny batch)
    if s_tot <= block_rows:
        return max(sub, _round_up(pl.cdiv(s_tot, 2), sub))   # split in ~2 for 2 TCs
    return block_rows


def _launch(xt, packed_params, block_rows):
    """xt: [D, s_tot, 128] feature-major batch slab. Returns f32[s_tot, 128]."""
    D, s_tot, lanes = xt.shape
    assert lanes == 128
    F = D - 1
    sub = 16 if xt.dtype == jnp.bfloat16 else 8
    s_blk = _choose_block_rows(s_tot, block_rows, sub)
    num_blocks = pl.cdiv(s_tot, s_blk)        # last block may be partial (masked)

    # Scoped-VMEM estimate: double-buffered input + output + elementwise temps.
    in_bytes = D * s_blk * 128 * xt.dtype.itemsize
    out_bytes = s_blk * 128 * 4
    est = 2 * in_bytes + 2 * out_bytes + 8 * s_blk * 128 * 4
    cp_kwargs = dict(dimension_semantics=("parallel",))
    if est > 12 * 1024 * 1024:                # above the smallest (v5e) scoped default
        cp_kwargs["vmem_limit_bytes"] = min(48 * 1024 * 1024, 2 * est)

    grid_spec = pltpu.PrefetchScalarGridSpec(
        num_scalar_prefetch=1,                # packed params -> SMEM once, pre-grid
        grid=(num_blocks,),
        in_specs=[pl.BlockSpec((D, s_blk, 128), lambda i, p: (0, i, 0))],
        out_specs=pl.BlockSpec((s_blk, 128), lambda i, p: (i, 0)),
    )
    return pl.pallas_call(
        functools.partial(gru_kernel, F=F),
        out_shape=jax.ShapeDtypeStruct((s_tot, 128), jnp.float32),
        grid_spec=grid_spec,
        compiler_params=pltpu.CompilerParams(**cp_kwargs),
    )(packed_params, xt)


def _feature_major_impl(x_fm, packed_params, block_rows):
    """x_fm: [D, N] feature-major (row 0 = h0, rows 1.. = x). Returns f32[N]."""
    D, N = x_fm.shape
    sub = 16 if x_fm.dtype == jnp.bfloat16 else 8
    s_tot = _round_up(pl.cdiv(N, 128), sub)   # minimal pad: one (8|16,128) granule
    n_pad = s_tot * 128
    if n_pad != N:
        x_fm = jnp.pad(x_fm, ((0, 0), (0, n_pad - N)))
    xt = x_fm.reshape(D, s_tot, 128)          # free reshape, no data movement
    out = _launch(xt, packed_params, block_rows)          # [s_tot, 128]
    # Padded / OOB rows may hold garbage (finite or NaN) -- sliced off here.
    return out.reshape(n_pad)[:N]


@functools.partial(jax.jit, static_argnames=("block_rows",))
def gru_forward_feature_major(x_fm, packed_params, *, block_rows=512):
    """Fast path for producers that emit feature-major data [input_size+1, N]
    (f32 or bf16): no wrapper transpose, so the kernel's single HBM read is the
    only traffic.  Returns f32 [N, 1]."""
    return _feature_major_impl(x_fm, packed_params, block_rows).reshape(-1, 1)


@functools.partial(jax.jit, static_argnames=("block_rows",))
def gru_module_forward(inputs, packed_params, *, block_rows=512):
    """PyTorch-layout compatibility path: inputs [B, n_actions, input_size+1]
    -> [B, n_actions, 1].  Pays one fused transpose(+pad) HBM pass to reach the
    feature-major layout; prefer gru_forward_feature_major when the producer
    can emit feature-major data directly."""
    B, A, D = inputs.shape
    N = B * A
    x_fm = inputs.reshape(N, D).T             # the single remaining layout pass
    out = _feature_major_impl(x_fm, packed_params, block_rows)
    return out.reshape(B, A, 1)


def _reference_forward(inputs, params):
    """Pure-JAX reference of the PyTorch forward (for a sanity check)."""
    B, A, D = inputs.shape
    flat = inputs.reshape(B * A, D).astype(jnp.float32)
    h0 = flat[:, :1]
    x = flat[:, 1:]
    gi = x @ params["weight_ih"].T + params["bias_ih"]
    gh = h0 @ params["weight_hh"].T + params["bias_hh"]
    r = jax.nn.sigmoid(gi[:, 0:1] + gh[:, 0:1])
    z = jax.nn.sigmoid(gi[:, 1:2] + gh[:, 1:2])
    n = jnp.tanh(gi[:, 2:3] + r * gh[:, 2:3])
    h = (1.0 - z) * n + z * h0
    out = h @ params["weight_out"].T + params["bias_out"]
    return out.reshape(B, A, 1)


if __name__ == "__main__":
    key = jax.random.PRNGKey(0)
    k_param, k1, k2 = jax.random.split(key, 3)

    input_size = 8
    params = make_gru_module_params(input_size, k_param)
    packed = pack_params_for_kernel(params)

    # Case 1: module-shaped small input (B=2, n_actions=4) -> single grid block.
    B, A = 2, 4
    x1 = jax.random.normal(k1, (B, A, input_size + 1), jnp.float32)
    out1 = gru_module_forward(x1, packed)
    jax.block_until_ready(out1)
    ref1 = _reference_forward(x1, params)
    assert out1.shape == (B, A, 1)
    assert jnp.allclose(out1, ref1, atol=1e-5, rtol=1e-5)

    # Case 2: larger batch -> 2 grid blocks with a partial (masked) last block.
    B2, A2 = 100, 30                         # N=3000 -> 24 sublane rows, s_blk=16
    x2 = jax.random.normal(k2, (B2, A2, input_size + 1), jnp.float32)
    out2 = gru_module_forward(x2, packed)
    ref2 = _reference_forward(x2, params)
    assert jnp.allclose(out2, ref2, atol=1e-5, rtol=1e-5)

    # Case 3: feature-major producer path (no wrapper transpose) with bf16 inputs.
    x2_bf16 = x2.astype(jnp.bfloat16)
    x_fm = x2_bf16.reshape(B2 * A2, input_size + 1).T     # producer-emitted layout
    out3 = gru_forward_feature_major(x_fm, packed)
    ref3 = _reference_forward(x2_bf16.astype(jnp.float32), params)
    assert out3.shape == (B2 * A2, 1)
    assert jnp.allclose(out3.reshape(B2, A2, 1), ref3, atol=1e-4, rtol=1e-4)

    jax.block_until_ready((out1, out2, out3))
    print("KERNEL_OK")
</pallas_src>

<mosaic_0001>
module attributes {stable_mosaic.version = 11 : i64} {
  func.func @gru_kernel(%arg0: i32, %arg1: memref<33xf32, #tpu.memory_space<smem>>, %arg2: memref<9x8x128xf32, #tpu.memory_space<vmem>>, %arg3: memref<8x128xf32, #tpu.memory_space<vmem>>) attributes {dimension_semantics = [#tpu.dimension_semantics<parallel>], iteration_bounds = array<i64: 1>, scalar_prefetch = 1 : i64, scratch_operands = 0 : i64, tpu.core_type = #tpu.core_type<tc>, window_params = [{transform_indices = @transform_0, window_bounds = array<i64: 9, 8, 128>}, {transform_indices = @transform_1, window_bounds = array<i64: 8, 128>}]} {
    %c0 = arith.constant 0 : index
    %c0_0 = arith.constant 0 : index
    %c0_1 = arith.constant 0 : index
    %0 = vector.load %arg2[%c0, %c0_0, %c0_1] : memref<9x8x128xf32, #tpu.memory_space<vmem>>, vector<1x8x128xf32>
    %1 = vector.shape_cast %0 : vector<1x8x128xf32> to vector<8x128xf32>
    %c24 = arith.constant 24 : index
    %2 = memref.load %arg1[%c24] : memref<33xf32, #tpu.memory_space<smem>>
    %3 = vector.broadcast %2 : f32 to vector<8x128xf32>
    %4 = arith.mulf %3, %1 : vector<8x128xf32>
    %c27 = arith.constant 27 : index
    %5 = memref.load %arg1[%c27] : memref<33xf32, #tpu.memory_space<smem>>
    %6 = vector.broadcast %5 : f32 to vector<8x128xf32>
    %7 = arith.addf %4, %6 : vector<8x128xf32>
    %c25 = arith.constant 25 : index
    %8 = memref.load %arg1[%c25] : memref<33xf32, #tpu.memory_space<smem>>
    %9 = vector.broadcast %8 : f32 to vector<8x128xf32>
    %10 = arith.mulf %9, %1 : vector<8x128xf32>
    %c28 = arith.constant 28 : index
    %11 = memref.load %arg1[%c28] : memref<33xf32, #tpu.memory_space<smem>>
    %12 = vector.broadcast %11 : f32 to vector<8x128xf32>
    %13 = arith.addf %10, %12 : vector<8x128xf32>
    %c29 = arith.constant 29 : index
    %14 = memref.load %arg1[%c29] : memref<33xf32, #tpu.memory_space<smem>>
    %15 = vector.broadcast %14 : f32 to vector<8x128xf32>
    %c1 = arith.constant 1 : index
    %c0_2 = arith.constant 0 : index
    %c0_3 = arith.constant 0 : index
    %16 = vector.load %arg2[%c1, %c0_2, %c0_3] : memref<9x8x128xf32, #tpu.memory_space<vmem>>, vector<1x8x128xf32>
    %17 = vector.shape_cast %16 : vector<1x8x128xf32> to vector<8x128xf32>
    %c0_4 = arith.constant 0 : index
    %18 = memref.load %arg1[%c0_4] : memref<33xf32, #tpu.memory_space<smem>>
    %19 = vector.broadcast %18 : f32 to vector<8x128xf32>
    %20 = arith.mulf %19, %17 : vector<8x128xf32>
    %21 = arith.addf %7, %20 : vector<8x128xf32>
    %c8 = arith.constant 8 : index
    %22 = memref.load %arg1[%c8] : memref<33xf32, #tpu.memory_space<smem>>
    %23 = vector.broadcast %22 : f32 to vector<8x128xf32>
    %24 = arith.mulf %23, %17 : vector<8x128xf32>
    %25 = arith.addf %13, %24 : vector<8x128xf32>
    %c16 = arith.constant 16 : index
    %26 = memref.load %arg1[%c16] : memref<33xf32, #tpu.memory_space<smem>>
    %27 = vector.broadcast %26 : f32 to vector<8x128xf32>
    %28 = arith.mulf %27, %17 : vector<8x128xf32>
    %29 = arith.addf %15, %28 : vector<8x128xf32>
    %c2 = arith.constant 2 : index
    %c0_5 = arith.constant 0 : index
    %c0_6 = arith.constant 0 : index
    %30 = vector.load %arg2[%c2, %c0_5, %c0_6] : memref<9x8x128xf32, #tpu.memory_space<vmem>>, vector<1x8x128xf32>
    %31 = vector.shape_cast %30 : vector<1x8x128xf32> to vector<8x128xf32>
    %c1_7 = arith.constant 1 : index
    %32 = memref.load %arg1[%c1_7] : memref<33xf32, #tpu.memory_space<smem>>
    %33 = vector.broadcast %32 : f32 to vector<8x128xf32>
    %34 = arith.mulf %33, %31 : vector<8x128xf32>
    %35 = arith.addf %21, %34 : vector<8x128xf32>
    %c9 = arith.constant 9 : index
    %36 = memref.load %arg1[%c9] : memref<33xf32, #tpu.memory_space<smem>>
    %37 = vector.broadcast %36 : f32 to vector<8x128xf32>
    %38 = arith.mulf %37, %31 : vector<8x128xf32>
    %39 = arith.addf %25, %38 : vector<8x128xf32>
    %c17 = arith.constant 17 : index
    %40 = memref.load %arg1[%c17] : memref<33xf32, #tpu.memory_space<smem>>
    %41 = vector.broadcast %40 : f32 to vector<8x128xf32>
    %42 = arith.mulf %41, %31 : vector<8x128xf32>
    %43 = arith.addf %29, %42 : vector<8x128xf32>
    %c3 = arith.constant 3 : index
    %c0_8 = arith.constant 0 : index
    %c0_9 = arith.constant 0 : index
    %44 = vector.load %arg2[%c3, %c0_8, %c0_9] : memref<9x8x128xf32, #tpu.memory_space<vmem>>, vector<1x8x128xf32>
    %45 = vector.shape_cast %44 : vector<1x8x128xf32> to vector<8x128xf32>
    %c2_10 = arith.constant 2 : index
    %46 = memref.load %arg1[%c2_10] : memref<33xf32, #tpu.memory_space<smem>>
    %47 = vector.broadcast %46 : f32 to vector<8x128xf32>
    %48 = arith.mulf %47, %45 : vector<8x128xf32>
    %49 = arith.addf %35, %48 : vector<8x128xf32>
    %c10 = arith.constant 10 : index
    %50 = memref.load %arg1[%c10] : memref<33xf32, #tpu.memory_space<smem>>
    %51 = vector.broadcast %50 : f32 to vector<8x128xf32>
    %52 = arith.mulf %51, %45 : vector<8x128xf32>
    %53 = arith.addf %39, %52 : vector<8x128xf32>
    %c18 = arith.constant 18 : index
    %54 = memref.load %arg1[%c18] : memref<33xf32, #tpu.memory_space<smem>>
    %55 = vector.broadcast %54 : f32 to vector<8x128xf32>
    %56 = arith.mulf %55, %45 : vector<8x128xf32>
    %57 = arith.addf %43, %56 : vector<8x128xf32>
    %c4 = arith.constant 4 : index
    %c0_11 = arith.constant 0 : index
    %c0_12 = arith.constant 0 : index
    %58 = vector.load %arg2[%c4, %c0_11, %c0_12] : memref<9x8x128xf32, #tpu.memory_space<vmem>>, vector<1x8x128xf32>
    %59 = vector.shape_cast %58 : vector<1x8x128xf32> to vector<8x128xf32>
    %c3_13 = arith.constant 3 : index
    %60 = memref.load %arg1[%c3_13] : memref<33xf32, #tpu.memory_space<smem>>
    %61 = vector.broadcast %60 : f32 to vector<8x128xf32>
    %62 = arith.mulf %61, %59 : vector<8x128xf32>
    %63 = arith.addf %49, %62 : vector<8x128xf32>
    %c11 = arith.constant 11 : index
    %64 = memref.load %arg1[%c11] : memref<33xf32, #tpu.memory_space<smem>>
    %65 = vector.broadcast %64 : f32 to vector<8x128xf32>
    %66 = arith.mulf %65, %59 : vector<8x128xf32>
    %67 = arith.addf %53, %66 : vector<8x128xf32>
    %c19 = arith.constant 19 : index
    %68 = memref.load %arg1[%c19] : memref<33xf32, #tpu.memory_space<smem>>
    %69 = vector.broadcast %68 : f32 to vector<8x128xf32>
    %70 = arith.mulf %69, %59 : vector<8x128xf32>
    %71 = arith.addf %57, %70 : vector<8x128xf32>
    %c5 = arith.constant 5 : index
    %c0_14 = arith.constant 0 : index
    %c0_15 = arith.constant 0 : index
    %72 = vector.load %arg2[%c5, %c0_14, %c0_15] : memref<9x8x128xf32, #tpu.memory_space<vmem>>, vector<1x8x128xf32>
    %73 = vector.shape_cast %72 : vector<1x8x128xf32> to vector<8x128xf32>
    %c4_16 = arith.constant 4 : index
    %74 = memref.load %arg1[%c4_16] : memref<33xf32, #tpu.memory_space<smem>>
    %75 = vector.broadcast %74 : f32 to vector<8x128xf32>
    %76 = arith.mulf %75, %73 : vector<8x128xf32>
    %77 = arith.addf %63, %76 : vector<8x128xf32>
    %c12 = arith.constant 12 : index
    %78 = memref.load %arg1[%c12] : memref<33xf32, #tpu.memory_space<smem>>
    %79 = vector.broadcast %78 : f32 to vector<8x128xf32>
    %80 = arith.mulf %79, %73 : vector<8x128xf32>
    %81 = arith.addf %67, %80 : vector<8x128xf32>
    %c20 = arith.constant 20 : index
    %82 = memref.load %arg1[%c20] : memref<33xf32, #tpu.memory_space<smem>>
    %83 = vector.broadcast %82 : f32 to vector<8x128xf32>
    %84 = arith.mulf %83, %73 : vector<8x128xf32>
    %85 = arith.addf %71, %84 : vector<8x128xf32>
    %c6 = arith.constant 6 : index
    %c0_17 = arith.constant 0 : index
    %c0_18 = arith.constant 0 : index
    %86 = vector.load %arg2[%c6, %c0_17, %c0_18] : memref<9x8x128xf32, #tpu.memory_space<vmem>>, vector<1x8x128xf32>
    %87 = vector.shape_cast %86 : vector<1x8x128xf32> to vector<8x128xf32>
    %c5_19 = arith.constant 5 : index
    %88 = memref.load %arg1[%c5_19] : memref<33xf32, #tpu.memory_space<smem>>
    %89 = vector.broadcast %88 : f32 to vector<8x128xf32>
    %90 = arith.mulf %89, %87 : vector<8x128xf32>
    %91 = arith.addf %77, %90 : vector<8x128xf32>
    %c13 = arith.constant 13 : index
    %92 = memref.load %arg1[%c13] : memref<33xf32, #tpu.memory_space<smem>>
    %93 = vector.broadcast %92 : f32 to vector<8x128xf32>
    %94 = arith.mulf %93, %87 : vector<8x128xf32>
    %95 = arith.addf %81, %94 : vector<8x128xf32>
    %c21 = arith.constant 21 : index
    %96 = memref.load %arg1[%c21] : memref<33xf32, #tpu.memory_space<smem>>
    %97 = vector.broadcast %96 : f32 to vector<8x128xf32>
    %98 = arith.mulf %97, %87 : vector<8x128xf32>
    %99 = arith.addf %85, %98 : vector<8x128xf32>
    %c7 = arith.constant 7 : index
    %c0_20 = arith.constant 0 : index
    %c0_21 = arith.constant 0 : index
    %100 = vector.load %arg2[%c7, %c0_20, %c0_21] : memref<9x8x128xf32, #tpu.memory_space<vmem>>, vector<1x8x128xf32>
    %101 = vector.shape_cast %100 : vector<1x8x128xf32> to vector<8x128xf32>
    %c6_22 = arith.constant 6 : index
    %102 = memref.load %arg1[%c6_22] : memref<33xf32, #tpu.memory_space<smem>>
    %103 = vector.broadcast %102 : f32 to vector<8x128xf32>
    %104 = arith.mulf %103, %101 : vector<8x128xf32>
    %105 = arith.addf %91, %104 : vector<8x128xf32>
    %c14 = arith.constant 14 : index
    %106 = memref.load %arg1[%c14] : memref<33xf32, #tpu.memory_space<smem>>
    %107 = vector.broadcast %106 : f32 to vector<8x128xf32>
    %108 = arith.mulf %107, %101 : vector<8x128xf32>
    %109 = arith.addf %95, %108 : vector<8x128xf32>
    %c22 = arith.constant 22 : index
    %110 = memref.load %arg1[%c22] : memref<33xf32, #tpu.memory_space<smem>>
    %111 = vector.broadcast %110 : f32 to vector<8x128xf32>
    %112 = arith.mulf %111, %101 : vector<8x128xf32>
    %113 = arith.addf %99, %112 : vector<8x128xf32>
    %c8_23 = arith.constant 8 : index
    %c0_24 = arith.constant 0 : index
    %c0_25 = arith.constant 0 : index
    %114 = vector.load %arg2[%c8_23, %c0_24, %c0_25] : memref<9x8x128xf32, #tpu.memory_space<vmem>>, vector<1x8x128xf32>
    %115 = vector.shape_cast %114 : vector<1x8x128xf32> to vector<8x128xf32>
    %c7_26 = arith.constant 7 : index
    %116 = memref.load %arg1[%c7_26] : memref<33xf32, #tpu.memory_space<smem>>
    %117 = vector.broadcast %116 : f32 to vector<8x128xf32>
    %118 = arith.mulf %117, %115 : vector<8x128xf32>
    %119 = arith.addf %105, %118 : vector<8x128xf32>
    %c15 = arith.constant 15 : index
    %120 = memref.load %arg1[%c15] : memref<33xf32, #tpu.memory_space<smem>>
    %121 = vector.broadcast %120 : f32 to vector<8x128xf32>
    %122 = arith.mulf %121, %115 : vector<8x128xf32>
    %123 = arith.addf %109, %122 : vector<8x128xf32>
    %c23 = arith.constant 23 : index
    %124 = memref.load %arg1[%c23] : memref<33xf32, #tpu.memory_space<smem>>
    %125 = vector.broadcast %124 : f32 to vector<8x128xf32>
    %126 = arith.mulf %125, %115 : vector<8x128xf32>
    %127 = arith.addf %113, %126 : vector<8x128xf32>
    %128 = arith.negf %119 : vector<8x128xf32>
    %129 = math.exp %128 : vector<8x128xf32>
    %cst = arith.constant 1.000000e+00 : f32
    %130 = vector.broadcast %cst : f32 to vector<8x128xf32>
    %131 = arith.addf %130, %129 : vector<8x128xf32>
    %132 = arith.divf %130, %131 : vector<8x128xf32>
    %133 = arith.negf %123 : vector<8x128xf32>
    %134 = math.exp %133 : vector<8x128xf32>
    %cst_27 = arith.constant 1.000000e+00 : f32
    %135 = vector.broadcast %cst_27 : f32 to vector<8x128xf32>
    %136 = arith.addf %135, %134 : vector<8x128xf32>
    %137 = arith.divf %135, %136 : vector<8x128xf32>
    %c26 = arith.constant 26 : index
    %138 = memref.load %arg1[%c26] : memref<33xf32, #tpu.memory_space<smem>>
    %139 = vector.broadcast %138 : f32 to vector<8x128xf32>
    %140 = arith.mulf %139, %1 : vector<8x128xf32>
    %c30 = arith.constant 30 : index
    %141 = memref.load %arg1[%c30] : memref<33xf32, #tpu.memory_space<smem>>
    %142 = vector.broadcast %141 : f32 to vector<8x128xf32>
    %143 = arith.addf %140, %142 : vector<8x128xf32>
    %144 = arith.mulf %132, %143 : vector<8x128xf32>
    %145 = arith.addf %127, %144 : vector<8x128xf32>
    %146 = math.tanh %145 : vector<8x128xf32>
    %cst_28 = arith.constant 1.000000e+00 : f32
    %147 = vector.broadcast %cst_28 : f32 to vector<8x128xf32>
    %148 = arith.subf %147, %137 : vector<8x128xf32>
    %149 = arith.mulf %148, %146 : vector<8x128xf32>
    %150 = arith.mulf %137, %1 : vector<8x128xf32>
    %151 = arith.addf %149, %150 : vector<8x128xf32>
    %c31 = arith.constant 31 : index
    %152 = memref.load %arg1[%c31] : memref<33xf32, #tpu.memory_space<smem>>
    %153 = vector.broadcast %152 : f32 to vector<8x128xf32>
    %154 = arith.mulf %153, %151 : vector<8x128xf32>
    %c32 = arith.constant 32 : index
    %155 = memref.load %arg1[%c32] : memref<33xf32, #tpu.memory_space<smem>>
    %156 = vector.broadcast %155 : f32 to vector<8x128xf32>
    %157 = arith.addf %154, %156 : vector<8x128xf32>
    %c0_29 = arith.constant 0 : index
    %c0_30 = arith.constant 0 : index
    %158 = vector.load %arg3[%c0_29, %c0_30] : memref<8x128xf32, #tpu.memory_space<vmem>>, vector<8x128xf32>
    tpu.vector_store %arg3[%c0_29, %c0_30], %157 {strides = array<i32>} : memref<8x128xf32, #tpu.memory_space<vmem>>, vector<8x128xf32>,
    return
  }
  func.func @transform_0(%arg0: i32, %arg1: memref<33xf32, #tpu.memory_space<smem>>) -> (i32, i32, i32) {
    %c0_i32 = arith.constant 0 : i32
    %c0_i32_0 = arith.constant 0 : i32
    %c0_i32_1 = arith.constant 0 : i32
    return %c0_i32, %arg0, %c0_i32_0 : i32, i32, i32
  }
  func.func @transform_1(%arg0: i32, %arg1: memref<33xf32, #tpu.memory_space<smem>>) -> (i32, i32) {
    %c0_i32 = arith.constant 0 : i32
    %c0_i32_0 = arith.constant 0 : i32
    return %arg0, %c0_i32 : i32, i32
  }
}

</mosaic_0001>

<llo_original>
// kernel: gru_module_forward.1
$region0: #{gru_module_forward.1}
  #allocation0 [shape = 'u32[]', space=smem, size = 0x4, offset = 0x4, fixed_abs, tag = 'smem constant byte address 0x4 - core index']
  #allocation1 [shape = 'u32[144,128]{1,0:T(1,128)}', space=vmem, size = 0x12000, scoped, tag = 'internal scratch']
  #allocation2 [shape = 's32[1]{0}', space=sflag, size = 0x4, scoped, tag = 'scoped memory for gru_module_forward.1']
  #allocation3 [shape = 'u8[512]{0}', space=smem, size = 0x200, scoped, tag = 'prefetched SMEM operand 0']
  %s0 = inlined_call_operand.vmem [shape: f32[33], index: 0, kind: input, shape index: {}]
  %s1 = inlined_call_operand.vmem [shape: f32[9,8,128], index: 1, kind: input, shape index: {}]
  %s2 = inlined_call_operand.vmem [shape: f32[8,128], index: 2, kind: output, shape index: {}]
  %s3 = sld [smem:[#allocation0]]
  $region14: #{gru_module_forward.1} parent=0
    _
  %s5 = ssub.s32 1, %s3
  %s6 = scalar_select 0, %s5, %s3
  %s7 = sshll.u32 %s0, 4
  %s8 = int_to_ptr.vmem [resolvable:$true] %s7
  %10 = dma.vmem_to_smem %s8, 16, [#allocation3], [#allocation2]
  %11 = dma.done [#allocation2], 16
  %12 = sfence
  // Predicated region
  $region2: #{gru_module_forward.1} parent=0 // pred_check
    _
  $region3: #{gru_module_forward.1} parent=0 // pred_check_branch
    %14 = sbr.rel (0) target = $region5
  $region4: #{gru_module_forward.1} parent=0 // pred_region
    _
  $region5: #{gru_module_forward.1} parent=0 // pred_fallthru
    _
  %v15 = vld [vmem:[%s1] sm:$0xff]
  %s16 = sld [smem:[#allocation3 + $0x18]]
  %v17 = vstv %s16
  %v18 = vmul.f32 %v17, %v15
  %s19 = sld [smem:[#allocation3 + $0x1b]]
  %v20 = vstv %s19
  %v21 = vadd.f32 %v18, %v20
  %s22 = sld [smem:[#allocation3 + $0x19]]
  %v23 = vstv %s22
  %v24 = vmul.f32 %v23, %v15
  %s25 = sld [smem:[#allocation3 + $0x1c]]
  %v26 = vstv %s25
  %v27 = vadd.f32 %v24, %v26
  %s28 = sld [smem:[#allocation3 + $0x1d]]
  %v29 = vstv %s28
  %s30 = scalar_lea.vmem %s1, 8
  %v31 = vld [vmem:[%s30] sm:$0xff]
  %s32 = sld [smem:[#allocation3]]
  %v33 = vstv %s32
  %v34 = vmul.f32 %v33, %v31
  %v35 = vadd.f32 %v21, %v34
  %s36 = sld [smem:[#allocation3 + $0x8]]
  %v37 = vstv %s36
  %v38 = vmul.f32 %v37, %v31
  %v39 = vadd.f32 %v27, %v38
  %s40 = sld [smem:[#allocation3 + $0x10]]
  %v41 = vstv %s40
  %v42 = vmul.f32 %v41, %v31
  %v43 = vadd.f32 %v29, %v42
  %s44 = scalar_lea.vmem %s1, 16
  %v45 = vld [vmem:[%s44] sm:$0xff]
  %s46 = sld [smem:[#allocation3 + $0x1]]
  %v47 = vstv %s46
  %v48 = vmul.f32 %v47, %v45
  %v49 = vadd.f32 %v35, %v48
  %s50 = sld [smem:[#allocation3 + $0x9]]
  %v51 = vstv %s50
  %v52 = vmul.f32 %v51, %v45
  %v53 = vadd.f32 %v39, %v52
  %s54 = sld [smem:[#allocation3 + $0x11]]
  %v55 = vstv %s54
  %v56 = vmul.f32 %v55, %v45
  %v57 = vadd.f32 %v43, %v56
  %s58 = scalar_lea.vmem %s1, 24
  %v59 = vld [vmem:[%s58] sm:$0xff]
  %s60 = sld [smem:[#allocation3 + $0x2]]
  %v61 = vstv %s60
  %v62 = vmul.f32 %v61, %v59
  %v63 = vadd.f32 %v49, %v62
  %s64 = sld [smem:[#allocation3 + $0xa]]
  %v65 = vstv %s64
  %v66 = vmul.f32 %v65, %v59
  %v67 = vadd.f32 %v53, %v66
  %s68 = sld [smem:[#allocation3 + $0x12]]
  %v69 = vstv %s68
  %v70 = vmul.f32 %v69, %v59
  %v71 = vadd.f32 %v57, %v70
  %s72 = scalar_lea.vmem %s1, 32
  %v73 = vld [vmem:[%s72] sm:$0xff]
  %s74 = sld [smem:[#allocation3 + $0x3]]
  %v75 = vstv %s74
  %v76 = vmul.f32 %v75, %v73
  %v77 = vadd.f32 %v63, %v76
  %s78 = sld [smem:[#allocation3 + $0xb]]
  %v79 = vstv %s78
  %v80 = vmul.f32 %v79, %v73
  %v81 = vadd.f32 %v67, %v80
  %s82 = sld [smem:[#allocation3 + $0x13]]
  %v83 = vstv %s82
  %v84 = vmul.f32 %v83, %v73
  %v85 = vadd.f32 %v71, %v84
  %s86 = scalar_lea.vmem %s1, 40
  %v87 = vld [vmem:[%s86] sm:$0xff]
  %s88 = sld [smem:[#allocation3 + $0x4]]
  %v89 = vstv %s88
  %v90 = vmul.f32 %v89, %v87
  %v91 = vadd.f32 %v77, %v90
  %s92 = sld [smem:[#allocation3 + $0xc]]
  %v93 = vstv %s92
  %v94 = vmul.f32 %v93, %v87
  %v95 = vadd.f32 %v81, %v94
  %s96 = sld [smem:[#allocation3 + $0x14]]
  %v97 = vstv %s96
  %v98 = vmul.f32 %v97, %v87
  %v99 = vadd.f32 %v85, %v98
  %s100 = scalar_lea.vmem %s1, 48
  %v101 = vld [vmem:[%s100] sm:$0xff]
  %s102 = sld [smem:[#allocation3 + $0x5]]
  %v103 = vstv %s102
  %v104 = vmul.f32 %v103, %v101
  %v105 = vadd.f32 %v91, %v104
  %s106 = sld [smem:[#allocation3 + $0xd]]
  %v107 = vstv %s106
  %v108 = vmul.f32 %v107, %v101
  %v109 = vadd.f32 %v95, %v108
  %s110 = sld [smem:[#allocation3 + $0x15]]
  %v111 = vstv %s110
  %v112 = vmul.f32 %v111, %v101
  %v113 = vadd.f32 %v99, %v112
  %s114 = scalar_lea.vmem %s1, 56
  %v115 = vld [vmem:[%s114] sm:$0xff]
  %s116 = sld [smem:[#allocation3 + $0x6]]
  %v117 = vstv %s116
  %v118 = vmul.f32 %v117, %v115
  %v119 = vadd.f32 %v105, %v118
  %s120 = sld [smem:[#allocation3 + $0xe]]
  %v121 = vstv %s120
  %v122 = vmul.f32 %v121, %v115
  %v123 = vadd.f32 %v109, %v122
  %s124 = sld [smem:[#allocation3 + $0x16]]
  %v125 = vstv %s124
  %v126 = vmul.f32 %v125, %v115
  %v127 = vadd.f32 %v113, %v126
  %s128 = scalar_lea.vmem %s1, 64
  %v129 = vld [vmem:[%s128] sm:$0xff]
  %s130 = sld [smem:[#allocation3 + $0x7]]
  %v131 = vstv %s130
  %v132 = vmul.f32 %v131, %v129
  %v133 = vadd.f32 %v119, %v132
  %s134 = sld [smem:[#allocation3 + $0xf]]
  %v135 = vstv %s134
  %v136 = vmul.f32 %v135, %v129
  %v137 = vadd.f32 %v123, %v136
  %s138 = sld [smem:[#allocation3 + $0x17]]
  %v139 = vstv %s138
  %v140 = vmul.f32 %v139, %v129
  %v141 = vadd.f32 %v127, %v140
  %v142 = vxor.u32 %v133, 2147483648
  %v143 = vmul.f32 %v142, 1.442695
  %v144 = vpow.pop %v143
  %v145 = vadd.f32 %v144, 1.0
  %v146 = vrcp.pop %v145
  %v147 = vmul.f32 1.0, %v146
  %v148 = vxor.u32 %v137, 2147483648
  %v149 = vmul.f32 %v148, 1.442695
  %v150 = vpow.pop %v149
  %v151 = vadd.f32 %v150, 1.0
  %v152 = vrcp.pop %v151
  %v153 = vmul.f32 1.0, %v152
  %s154 = sld [smem:[#allocation3 + $0x1a]]
  %v155 = vstv %s154
  %v156 = vmul.f32 %v155, %v15
  %s157 = sld [smem:[#allocation3 + $0x1e]]
  %v158 = vstv %s157
  %v159 = vadd.f32 %v156, %v158
  %v160 = vmul.f32 %v147, %v159
  %v161 = vadd.f32 %v141, %v160
  %v162 = vtanh.pop %v161
  %v163 = vsub.f32 1.0, %v153
  %v164 = vmul.f32 %v163, %v162
  %v165 = vmul.f32 %v153, %v15
  %v166 = vadd.f32 %v164, %v165
  %s167 = sld [smem:[#allocation3 + $0x1f]]
  %v168 = vstv %s167
  %v169 = vmul.f32 %v168, %v166
  %s170 = sld [smem:[#allocation3 + $0x20]]
  %v171 = vstv %s170
  %v172 = vadd.f32 %v169, %v171
  %173 = vst [vmem:[%s2] sm:$0xff] %v172
  // Predicated region
  $region6: #{gru_module_forward.1} parent=0 // pred_check
    _
  $region7: #{gru_module_forward.1} parent=0 // pred_check_branch
    %175 = sbr.rel (0) target = $region9
  $region8: #{gru_module_forward.1} parent=0 // pred_region
    _
  $region9: #{gru_module_forward.1} parent=0 // pred_fallthru
    _
  // Predicated region
  $region10: #{gru_module_forward.1} parent=0 // pred_check
    _
  $region11: #{gru_module_forward.1} parent=0 // pred_check_branch
    %177 = sbr.rel (0) target = $region13
  $region12: #{gru_module_forward.1} parent=0 // pred_region
    _
  $region13: #{gru_module_forward.1} parent=0 // pred_fallthru
    _

</llo_original>
